<compile_context>
chip_gen: v5e
topology: v5e:2x2
jax: 0.10.0
libtpu: 0.0.40
codegen_flags: <defaults>
</compile_context>

<pallas_src>
import functools

import jax
import jax.numpy as jnp
from jax.experimental import pallas as pl
from jax.experimental.pallas import tpu as pltpu


# ----------------------------- kernels ---------------------------------------


def _bits_to_uniform(bits):
    """uint32 random bits -> float32 uniform in [0, 1) (23-bit resolution)."""
    bits = pltpu.bitcast(bits, jnp.uint32)
    mant = (bits >> jnp.uint32(9)) | jnp.uint32(0x3F800000)   # float32 in [1, 2)
    return pltpu.bitcast(mant, jnp.float32) - 1.0


def _reparam_prng_kernel(seed_ref, mu_ref, logvar_ref, out_ref):
    """out = mu + eps * exp(0.5 * logvar), eps drawn by the TPU hardware PRNG."""
    # Decorrelate noise across grid steps (and across v7x TensorCores).
    pltpu.prng_seed(seed_ref[0] + pl.program_id(0))
    shape = mu_ref.shape
    u1 = _bits_to_uniform(pltpu.prng_random_bits(shape))
    u2 = _bits_to_uniform(pltpu.prng_random_bits(shape))
    # Box-Muller: eps ~ N(0, 1).  (1 - u1) is in (0, 1] so the log is finite.
    r = jnp.sqrt(-2.0 * jnp.log(1.0 - u1))
    eps = r * jnp.cos((2.0 * jnp.pi) * u2)
    std = jnp.exp(0.5 * logvar_ref[...].astype(jnp.float32))
    out_ref[...] = (mu_ref[...].astype(jnp.float32) + eps * std).astype(out_ref.dtype)


def _reparam_eps_kernel(mu_ref, logvar_ref, eps_ref, out_ref):
    """Fallback for non-TPU / interpret backends: eps streamed from HBM."""
    std = jnp.exp(0.5 * logvar_ref[...].astype(jnp.float32))
    out_ref[...] = (
        mu_ref[...].astype(jnp.float32) + eps_ref[...].astype(jnp.float32) * std
    ).astype(out_ref.dtype)


# ----------------------------- dispatch ---------------------------------------


def _run_2d(mu2d, logvar2d, seed, key, block_rows, use_tpu_prng):
    rows, cols = mu2d.shape
    dtype = mu2d.dtype
    grid = (pl.cdiv(rows, block_rows),)
    spec = pl.BlockSpec((block_rows, cols), lambda i, *_: (i, 0))
    cparams = pltpu.CompilerParams(
        dimension_semantics=("parallel",),        # independent tiles -> megacore
        vmem_limit_bytes=32 * 1024 * 1024,        # safe on v5e/v6e/v7x
    )
    out_shape = jax.ShapeDtypeStruct((rows, cols), dtype)

    if use_tpu_prng:
        return pl.pallas_call(
            _reparam_prng_kernel,
            out_shape=out_shape,
            grid_spec=pltpu.PrefetchScalarGridSpec(
                num_scalar_prefetch=1,            # seed lands in SMEM
                grid=grid,
                in_specs=[spec, spec],
                out_specs=spec,
            ),
            compiler_params=cparams,
        )(seed, mu2d, logvar2d)

    # Non-TPU fallback: draw eps in the wrapper, stream it through the kernel.
    eps = jax.random.normal(key, (rows, cols), dtype=dtype)
    return pl.pallas_call(
        _reparam_eps_kernel,
        out_shape=out_shape,
        grid=grid,
        in_specs=[spec, spec, spec],
        out_specs=spec,
        compiler_params=cparams,
    )(mu2d, logvar2d, eps)


def _pick_block_rows(rows, row_bytes, sublane, target_block_bytes):
    """Rows per block: ~target bytes, >= 2 grid steps, (8,128)-tiling friendly."""
    if rows <= sublane:
        return rows                               # single block = full dim (legal)
    budget = max(sublane, target_block_bytes // row_bytes)
    block_rows = min(budget, pl.cdiv(rows, 2))    # >= 2 steps -> both v7x TCs work
    block_rows = pl.cdiv(block_rows, sublane) * sublane
    return min(block_rows, rows)


@functools.partial(
    jax.jit, static_argnames=("lane_width", "target_block_bytes", "use_tpu_prng")
)
def reparameterize(mu, logvar, key, *, lane_width=1024,
                   target_block_bytes=2 * 1024 * 1024, use_tpu_prng=None):
    """Pallas TPU implementation of Reparameterization.forward(mu, logvar)."""
    assert mu.shape == logvar.shape and mu.dtype == logvar.dtype
    orig_shape = mu.shape
    dtype = mu.dtype
    itemsize = jnp.dtype(dtype).itemsize
    sublane = max(8, 32 // itemsize)              # 8 for f32, 16 for bf16, ...

    if use_tpu_prng is None:
        use_tpu_prng = jax.default_backend() == "tpu"

    # int32 seed for the in-kernel hardware PRNG (scalar-prefetched into SMEM).
    seed = jax.random.randint(key, (1,), 0, jnp.iinfo(jnp.int32).max, dtype=jnp.int32)

    last = orig_shape[-1] if mu.ndim else 1
    if mu.ndim >= 2 and last % 128 == 0 and last * itemsize <= target_block_bytes:
        # Fast path: zero wrapper-side data movement.  Collapse leading dims,
        # keep the lane-aligned last dim as the lane axis.
        rows = mu.size // last
        mu2d = mu.reshape(rows, last)
        lv2d = logvar.reshape(rows, last)
        block_rows = _pick_block_rows(rows, last * itemsize, sublane, target_block_bytes)
        out2d = _run_2d(mu2d, lv2d, seed, key, block_rows, use_tpu_prng)
        return out2d.reshape(orig_shape)

    # General path: flatten into a lane-dense (rows, lane_width) slab, padding
    # only up to one lane-row (< lane_width elems).  A ragged last *block* is
    # masked by Pallas, so rows are NOT rounded up to block_rows.
    total = mu.size
    rows = pl.cdiv(total, lane_width)
    pad = rows * lane_width - total

    def to_slab(x):
        flat = x.reshape(-1)
        if pad:
            flat = jnp.pad(flat, (0, pad))        # logvar pad = 0 -> std = 1, finite
        return flat.reshape(rows, lane_width)

    mu2d, lv2d = to_slab(mu), to_slab(logvar)
    block_rows = _pick_block_rows(rows, lane_width * itemsize, sublane, target_block_bytes)
    out2d = _run_2d(mu2d, lv2d, seed, key, block_rows, use_tpu_prng)
    out = out2d.reshape(-1)
    if pad:
        out = out[:total]
    return out.reshape(orig_shape)


if __name__ == "__main__":
    key = jax.random.PRNGKey(0)
    k_mu, k_lv, k_eps, k_mu2, k_lv2, k_eps2 = jax.random.split(key, 6)

    # --- Case 1: lane-aligned last dim (fast path, 2 grid steps) -------------
    B, D = 16, 256
    mu = jax.random.normal(k_mu, (B, D), dtype=jnp.float32)
    logvar = jax.random.normal(k_lv, (B, D), dtype=jnp.float32) * 0.1
    z = reparameterize(mu, logvar, k_eps)
    jax.block_until_ready(z)

    assert z.shape == mu.shape and z.dtype == mu.dtype
    assert bool(jnp.all(jnp.isfinite(z)))
    # Noise is drawn in-kernel by the HW PRNG, so there is no bitwise JAX
    # reference; check the distribution of (z - mu) / std ~ N(0, 1) instead.
    resid = (z - mu) / jnp.exp(0.5 * logvar)
    n = resid.size
    assert abs(float(jnp.mean(resid))) < 5.0 / (n ** 0.5)
    assert 0.85 < float(jnp.std(resid)) < 1.15

    # --- Case 2: ragged last dim (flatten + minimal-pad path) ----------------
    B2, D2 = 6, 200
    mu2 = jax.random.normal(k_mu2, (B2, D2), dtype=jnp.float32)
    logvar2 = jax.random.normal(k_lv2, (B2, D2), dtype=jnp.float32) * 0.1
    z2 = reparameterize(mu2, logvar2, k_eps2)
    jax.block_until_ready(z2)

    assert z2.shape == mu2.shape and z2.dtype == mu2.dtype
    assert bool(jnp.all(jnp.isfinite(z2)))
    resid2 = (z2 - mu2) / jnp.exp(0.5 * logvar2)
    n2 = resid2.size
    assert abs(float(jnp.mean(resid2))) < 5.0 / (n2 ** 0.5)
    assert 0.75 < float(jnp.std(resid2)) < 1.25

    print("KERNEL_OK")
</pallas_src>

<mosaic_0001>
module attributes {stable_mosaic.version = 11 : i64} {
  func.func @_reparam_eps_kernel(%arg0: i32, %arg1: memref<8x256xf32, #tpu.memory_space<vmem>>, %arg2: memref<8x256xf32, #tpu.memory_space<vmem>>, %arg3: memref<8x256xf32, #tpu.memory_space<vmem>>, %arg4: memref<8x256xf32, #tpu.memory_space<vmem>>) attributes {dimension_semantics = [#tpu.dimension_semantics<parallel>], iteration_bounds = array<i64: 2>, scalar_prefetch = 0 : i64, scratch_operands = 0 : i64, tpu.core_type = #tpu.core_type<tc>, window_params = [{transform_indices = @transform_0, window_bounds = array<i64: 8, 256>}, {transform_indices = @transform_1, window_bounds = array<i64: 8, 256>}, {transform_indices = @transform_2, window_bounds = array<i64: 8, 256>}, {transform_indices = @transform_3, window_bounds = array<i64: 8, 256>}]} {
    %c0 = arith.constant 0 : index
    %c0_0 = arith.constant 0 : index
    %0 = vector.load %arg2[%c0, %c0_0] : memref<8x256xf32, #tpu.memory_space<vmem>>, vector<8x256xf32>
    %cst = arith.constant 5.000000e-01 : f32
    %1 = vector.broadcast %cst : f32 to vector<8x256xf32>
    %2 = arith.mulf %1, %0 : vector<8x256xf32>
    %3 = math.exp %2 : vector<8x256xf32>
    %c0_1 = arith.constant 0 : index
    %c0_2 = arith.constant 0 : index
    %4 = vector.load %arg1[%c0_1, %c0_2] : memref<8x256xf32, #tpu.memory_space<vmem>>, vector<8x256xf32>
    %c0_3 = arith.constant 0 : index
    %c0_4 = arith.constant 0 : index
    %5 = vector.load %arg3[%c0_3, %c0_4] : memref<8x256xf32, #tpu.memory_space<vmem>>, vector<8x256xf32>
    %6 = arith.mulf %5, %3 : vector<8x256xf32>
    %7 = arith.addf %4, %6 : vector<8x256xf32>
    %c0_5 = arith.constant 0 : index
    %c0_6 = arith.constant 0 : index
    %8 = vector.load %arg4[%c0_5, %c0_6] : memref<8x256xf32, #tpu.memory_space<vmem>>, vector<8x256xf32>
    tpu.vector_store %arg4[%c0_5, %c0_6], %7 {strides = array<i32>} : memref<8x256xf32, #tpu.memory_space<vmem>>, vector<8x256xf32>,
    return
  }
  func.func @transform_0(%arg0: i32) -> (i32, i32) {
    %c0_i32 = arith.constant 0 : i32
    %c0_i32_0 = arith.constant 0 : i32
    return %arg0, %c0_i32 : i32, i32
  }
  func.func @transform_1(%arg0: i32) -> (i32, i32) {
    %c0_i32 = arith.constant 0 : i32
    %c0_i32_0 = arith.constant 0 : i32
    return %arg0, %c0_i32 : i32, i32
  }
  func.func @transform_2(%arg0: i32) -> (i32, i32) {
    %c0_i32 = arith.constant 0 : i32
    %c0_i32_0 = arith.constant 0 : i32
    return %arg0, %c0_i32 : i32, i32
  }
  func.func @transform_3(%arg0: i32) -> (i32, i32) {
    %c0_i32 = arith.constant 0 : i32
    %c0_i32_0 = arith.constant 0 : i32
    return %arg0, %c0_i32 : i32, i32
  }
}

</mosaic_0001>

<llo_original>
// kernel: reparameterize.1
$region0: #{reparameterize.1}
  #allocation0 [shape = 'u32[]', space=smem, size = 0x4, offset = 0x4, fixed_abs, tag = 'smem constant byte address 0x4 - core index']
  #allocation1 [shape = 'u32[72,128]{1,0:T(1,128)}', space=vmem, size = 0x9000, scoped, tag = 'internal scratch']
  %s0 = inlined_call_operand.vmem [shape: f32[16,256], index: 0, kind: input, shape index: {}]
  %s1 = inlined_call_operand.hbm [shape: f32[16,256], index: 1, kind: input, shape index: {}]
  %s2 = inlined_call_operand.vmem [shape: f32[16,256], index: 2, kind: input, shape index: {}]
  %s3 = inlined_call_operand.hbm [shape: f32[16,256], index: 3, kind: output, shape index: {}]
  %s4 = sld [smem:[#allocation0]]
  $region49: #{reparameterize.1} parent=0
    _
  %s6 = ssub.s32 1, %s4
  %s7 = scalar_select 0, %s6, %s4
  $region1: #{reparameterize.1} parent=0
    #allocation2 [shape = 'u8[16384]{0}', space=vmem, size = 0x4000, scoped, tag = 'input window, operand 1']
    #allocation3 [shape = 's32[2]{0}', space=sflag, size = 0x8, scoped, tag = 'scoped memory for reparameterize.1']
    #allocation4 [shape = 's32[2]{0}', space=sflag, size = 0x8, scoped, tag = 'scoped memory for reparameterize.1']
    #allocation5 [shape = 'u8[16384]{0}', space=vmem, size = 0x4000, scoped, tag = 'output window, operand 0']
    %8 = vsyncpa [#allocation3], 0
    %s9 = scalar_lea.sflag [#allocation3], 1
    %10 = vsyncpa %s9, 0
    %11 = vsyncpa [#allocation4], 0
    %s12 = scalar_lea.sflag [#allocation4], 1
    %13 = vsyncpa %s12, 0
    loop: start=0, step=1, limit=4
    $region2: #{reparameterize.1} parent=1 // loop_pre_header
      _
    $region3: #{reparameterize.1} parent=1 // loop_header
      %s15 = sphi 0, %s19
      %p16 = scmp.ge.s32.totalorder %s15, 4
      %s25 = sphi 0, %s27
      %s28 = sphi 0, %s25
      %s29 = sphi 0, %s28
      %s45 = sphi 0, %s29
      %s51 = sphi 0, %s53
      %s54 = sphi 0, %s51
      %s55 = sphi 0, %s54
      %s71 = sphi 0, %s55
      %s77 = sphi 0, %s79
      %s80 = sphi 0, %s77
      %s81 = sphi 0, %s80
      %s97 = sphi 0, %s81
      %s103 = sphi 0, %s105
      %s106 = sphi 0, %s103
      %s107 = sphi 0, %s106
      %s123 = sphi 0, %s107
    $region4: #{reparameterize.1} parent=1 // loop_header_branch
      %18 = sbr.rel (%p16) target = $region8
    $region5: #{reparameterize.1} parent=1 // loop_body
      %s20 = ssub.s32 %s15, 1
      %s21 = ssub.s32 %s15, 2
      %s22 = sadd.s32 %s15, 1
      %s23 = ssub.s32 %s15, %s22
      %p24 = scmp.eq.s32.totalorder %s23, 0
      %s26 = sadd.s32 %s25, 1
      %s27 = scalar_select %p24, %s25, %s26
      %p30 = pneg %p24
      %p31 = scmp.eq.s32.totalorder %s15, 1
      %p32 = por %p30, %p31
      %p33 = scmp.ne.s32.totalorder %s25, %s28
      %p34 = scmp.eq.s32.totalorder %s15, 0
      %p35 = por %p33, %p34
      %p36 = scmp.ne.s32.totalorder %s25, %s28
      %p37 = scmp.eq.s32.totalorder %s20, 1
      %p38 = por %p36, %p37
      %p39 = scmp.ne.s32.totalorder %s28, %s29
      %p40 = scmp.eq.s32.totalorder %s20, 0
      %p41 = por %p39, %p40
      %p42 = scmp.ne.s32.totalorder %s28, %s29
      %p43 = scmp.eq.s32.totalorder %s21, 1
      %p44 = por %p42, %p43
      %p46 = scmp.ne.s32.totalorder %s29, %s45
      %p47 = scmp.eq.s32.totalorder %s21, 0
      %p48 = por %p46, %p47
      %s49 = ssub.s32 %s15, %s22
      %p50 = scmp.eq.s32.totalorder %s49, 0
      %s52 = sadd.s32 %s51, 1
      %s53 = scalar_select %p50, %s51, %s52
      %p56 = pneg %p50
      %p57 = scmp.eq.s32.totalorder %s15, 1
      %p58 = por %p56, %p57
      %p59 = scmp.ne.s32.totalorder %s51, %s54
      %p60 = scmp.eq.s32.totalorder %s15, 0
      %p61 = por %p59, %p60
      %p62 = scmp.ne.s32.totalorder %s51, %s54
      %p63 = scmp.eq.s32.totalorder %s20, 1
      %p64 = por %p62, %p63
      %p65 = scmp.ne.s32.totalorder %s54, %s55
      %p66 = scmp.eq.s32.totalorder %s20, 0
      %p67 = por %p65, %p66
      %p68 = scmp.ne.s32.totalorder %s54, %s55
      %p69 = scmp.eq.s32.totalorder %s21, 1
      %p70 = por %p68, %p69
      %p72 = scmp.ne.s32.totalorder %s55, %s71
      %p73 = scmp.eq.s32.totalorder %s21, 0
      %p74 = por %p72, %p73
      %s75 = ssub.s32 %s15, %s22
      %p76 = scmp.eq.s32.totalorder %s75, 0
      %s78 = sadd.s32 %s77, 1
      %s79 = scalar_select %p76, %s77, %s78
      %p82 = pneg %p76
      %p83 = scmp.eq.s32.totalorder %s15, 1
      %p84 = por %p82, %p83
      %p85 = scmp.ne.s32.totalorder %s77, %s80
      %p86 = scmp.eq.s32.totalorder %s15, 0
      %p87 = por %p85, %p86
      %p88 = scmp.ne.s32.totalorder %s77, %s80
      %p89 = scmp.eq.s32.totalorder %s20, 1
      %p90 = por %p88, %p89
      %p91 = scmp.ne.s32.totalorder %s80, %s81
      %p92 = scmp.eq.s32.totalorder %s20, 0
      %p93 = por %p91, %p92
      %p94 = scmp.ne.s32.totalorder %s80, %s81
      %p95 = scmp.eq.s32.totalorder %s21, 1
      %p96 = por %p94, %p95
      %p98 = scmp.ne.s32.totalorder %s81, %s97
      %p99 = scmp.eq.s32.totalorder %s21, 0
      %p100 = por %p98, %p99
      %s101 = ssub.s32 %s15, %s22
      %p102 = scmp.eq.s32.totalorder %s101, 0
      %s104 = sadd.s32 %s103, 1
      %s105 = scalar_select %p102, %s103, %s104
      %p108 = pneg %p102
      %p109 = scmp.eq.s32.totalorder %s15, 1
      %p110 = por %p108, %p109
      %p111 = scmp.ne.s32.totalorder %s103, %s106
      %p112 = scmp.eq.s32.totalorder %s15, 0
      %p113 = por %p111, %p112
      %p114 = scmp.ne.s32.totalorder %s103, %s106
      %p115 = scmp.eq.s32.totalorder %s20, 1
      %p116 = por %p114, %p115
      %p117 = scmp.ne.s32.totalorder %s106, %s107
      %p118 = scmp.eq.s32.totalorder %s20, 0
      %p119 = por %p117, %p118
      %p120 = scmp.ne.s32.totalorder %s106, %s107
      %p121 = scmp.eq.s32.totalorder %s21, 1
      %p122 = por %p120, %p121
      %p124 = scmp.ne.s32.totalorder %s107, %s123
      %p125 = scmp.eq.s32.totalorder %s21, 0
      %p126 = por %p124, %p125
      %p127 = scmp.le.s32.totalorder 1, %s15
      %p128 = scmp.lt.s32.totalorder %s15, 3
      %p129 = pnand %p127, %p128
      %p130 = pneg %p129
      // Predicated region
      $region9: #{reparameterize.1} parent=5 // pred_check
        _
      $region10: #{reparameterize.1} parent=5 // pred_check_branch
        %132 = sbr.rel (%p129) target = $region12
      $region11: #{reparameterize.1} parent=5 // pred_region
        %s133 = ssub.s32 %s15, 1
      $region12: #{reparameterize.1} parent=5 // pred_fallthru
        _
      %p134 = scmp.lt.s32.totalorder %s15, 2
      // Predicated region
      $region13: #{reparameterize.1} parent=5 // pred_check
        %p135 = pneg %p134
      $region14: #{reparameterize.1} parent=5 // pred_check_branch
        %137 = sbr.rel (%p135) target = $region16
      $region15: #{reparameterize.1} parent=5 // pred_region
        // Predicated region
        $region17: #{reparameterize.1} parent=15 // pred_check
          %p138 = pneg %p35
        $region18: #{reparameterize.1} parent=15 // pred_check_branch
          %140 = sbr.rel (%p138) target = $region20
        $region19: #{reparameterize.1} parent=15 // pred_region
          %p141 = scmp.lt.s32.totalorder %s15, 1
          %s142 = scalar_select %p141, %s15, 1
          %s143 = smul.addr %s142, 2
          %s144 = smul.addr %s143, 8
          %s145 = scalar_lea.vmem %s0, %s144
        $region20: #{reparameterize.1} parent=15 // pred_fallthru
          _
        // Predicated region
        $region21: #{reparameterize.1} parent=15 // pred_check
          %p146 = pneg %p61
        $region22: #{reparameterize.1} parent=15 // pred_check_branch
          %148 = sbr.rel (%p146) target = $region24
        $region23: #{reparameterize.1} parent=15 // pred_region
          %s149 = sand.u32 %s51, 1
          %s150 = scalar_lea.sflag [#allocation3], %s149
          %s151 = sand.u32 %s51, 1
          %s152 = smul.addr %s151, 16
          %s153 = scalar_lea.vmem [#allocation2], %s152
          %155 = vsyncadd %s150, 0
          %s156 = smul.addr %s15, 2
          %s157 = smul.addr %s156, 8
          %s158 = scalar_lea.hbm %s1, %s157
          %s160 = sshll.u32 %s158, 4
          %s161 = int_to_ptr.hbm [resolvable:$true] %s160
          %s162 = sshll.u32 %s153, 4
          %s163 = int_to_ptr.vmem [resolvable:$true] %s162
          %165 = dma.hbm_to_vmem [thread:$0]  %s161, 256, %s163, %s150
        $region24: #{reparameterize.1} parent=15 // pred_fallthru
          _
        // Predicated region
        $region25: #{reparameterize.1} parent=15 // pred_check
          %p166 = pneg %p87
        $region26: #{reparameterize.1} parent=15 // pred_check_branch
          %168 = sbr.rel (%p166) target = $region28
        $region27: #{reparameterize.1} parent=15 // pred_region
          %p169 = scmp.lt.s32.totalorder %s15, 1
          %s170 = scalar_select %p169, %s15, 1
          %s171 = smul.addr %s170, 2
          %s172 = smul.addr %s171, 8
          %s173 = scalar_lea.vmem %s2, %s172
        $region28: #{reparameterize.1} parent=15 // pred_fallthru
          _
      $region16: #{reparameterize.1} parent=5 // pred_fallthru
        _
      %p174 = scmp.le.s32.totalorder 1, %s15
      %p175 = scmp.lt.s32.totalorder %s15, 3
      %p176 = pnand %p174, %p175
      %p177 = pneg %p176
      // Predicated region
      $region29: #{reparameterize.1} parent=5 // pred_check
        _
      $region30: #{reparameterize.1} parent=5 // pred_check_branch
        %179 = sbr.rel (%p176) target = $region32
      $region31: #{reparameterize.1} parent=5 // pred_region
        %s180 = ssub.s32 %s15, 1
        %s181 = sand.u32 %s54, 1
        %s182 = scalar_lea.sflag [#allocation3], %s181
        %s183 = sand.u32 %s54, 1
        %s184 = smul.addr %s183, 16
        %s185 = scalar_lea.vmem [#allocation2], %s184
        // Predicated region
        $region33: #{reparameterize.1} parent=31 // pred_check
          %p186 = pneg %p67
        $region34: #{reparameterize.1} parent=31 // pred_check_branch
          %188 = sbr.rel (%p186) target = $region36
        $region35: #{reparameterize.1} parent=31 // pred_region
          %190 = dma.done %s182, 256
        $region36: #{reparameterize.1} parent=31 // pred_fallthru
          _
        %p191 = scmp.lt.s32.totalorder %s20, 1
        %s192 = scalar_select %p191, %s20, 1
        %s193 = smul.addr %s192, 2
        %s194 = smul.addr %s193, 8
        %s195 = scalar_lea.vmem %s0, %s194
        %p196 = pneg %p41
        %p197 = pneg %p38
        %s198 = sand.u32 %s54, 1
        %s199 = scalar_lea.sflag [#allocation3], %s198
        %s200 = sand.u32 %s54, 1
        %s201 = smul.addr %s200, 16
        %s202 = scalar_lea.vmem [#allocation2], %s201
        %p203 = pneg %p67
        %p204 = pneg %p64
        %p205 = scmp.lt.s32.totalorder %s20, 1
        %s206 = scalar_select %p205, %s20, 1
        %s207 = smul.addr %s206, 2
        %s208 = smul.addr %s207, 8
        %s209 = scalar_lea.vmem %s2, %s208
        %p210 = pneg %p93
        %p211 = pneg %p90
        %p212 = pneg %p119
        %p213 = pneg %p116
        %s214 = sand.u32 %s106, 1
        %s215 = scalar_lea.sflag [#allocation4], %s214
        %s216 = sand.u32 %s106, 1
        %s217 = smul.addr %s216, 16
        %s218 = scalar_lea.vmem [#allocation5], %s217
        %p219 = scmp.lt.s32.totalorder %s20, 1
        %s220 = scalar_select %p219, %s20, 1
        %s221 = smul.addr %s220, 2
        %s222 = smul.addr %s221, 8
        %s223 = scalar_lea.vmem %s0, %s222
        %p224 = scmp.lt.s32.totalorder %s20, 1
        %s225 = scalar_select %p224, %s20, 1
        %s226 = smul.addr %s225, 2
        %s227 = smul.addr %s226, 8
        %s228 = scalar_lea.vmem %s2, %s227
        %v229 = vld [vmem:[%s185] sm:$0xff]
        %v230 = vld [vmem:[%s185 + $0x8] sm:$0xff]
        %v231 = vmul.f32 %v229, 0.5
        %v232 = vmul.f32 %v230, 0.5
        %v233 = vmul.f32 %v231, 1.442695
        %v234 = vpow.pop %v233
        %v235 = vmul.f32 %v232, 1.442695
        %v236 = vpow.pop %v235
        %v237 = vld [vmem:[%s223] sm:$0xff]
        %v238 = vld [vmem:[%s223 + $0x8] sm:$0xff]
        %v239 = vld [vmem:[%s228] sm:$0xff]
        %v240 = vld [vmem:[%s228 + $0x8] sm:$0xff]
        %v241 = vmul.f32 %v239, %v234
        %v242 = vmul.f32 %v240, %v236
        %v243 = vadd.f32 %v237, %v241
        %v244 = vadd.f32 %v238, %v242
        %245 = vst [vmem:[%s218] sm:$0xff] %v243
        %246 = vst [vmem:[%s218 + $0x8] sm:$0xff] %v244
        %s247 = sand.u32 %s106, 1
        %s248 = scalar_lea.sflag [#allocation4], %s247
        %s249 = sand.u32 %s106, 1
        %s250 = smul.addr %s249, 16
        %s251 = scalar_lea.vmem [#allocation5], %s250
        // Predicated region
        $region37: #{reparameterize.1} parent=31 // pred_check
          %p252 = pneg %p116
        $region38: #{reparameterize.1} parent=31 // pred_check_branch
          %254 = sbr.rel (%p252) target = $region40
        $region39: #{reparameterize.1} parent=31 // pred_region
          %256 = vsyncadd %s248, 0
          %s257 = smul.addr %s20, 2
          %s258 = smul.addr %s257, 8
          %s259 = scalar_lea.hbm %s3, %s258
          %s261 = sshll.u32 %s251, 4
          %s262 = int_to_ptr.vmem [resolvable:$true] %s261
          %s263 = sshll.u32 %s259, 4
          %s264 = int_to_ptr.hbm [resolvable:$true] %s263
          %266 = dma.vmem_to_hbm [thread:$0]  %s262, 256, %s264, %s248
        $region40: #{reparameterize.1} parent=31 // pred_fallthru
          _
      $region32: #{reparameterize.1} parent=5 // pred_fallthru
        _
      %p267 = scmp.le.s32.totalorder 2, %s15
      // Predicated region
      $region41: #{reparameterize.1} parent=5 // pred_check
        %p268 = pneg %p267
      $region42: #{reparameterize.1} parent=5 // pred_check_branch
        %270 = sbr.rel (%p268) target = $region44
      $region43: #{reparameterize.1} parent=5 // pred_region
        %s271 = ssub.s32 %s15, 2
        // Predicated region
        $region45: #{reparameterize.1} parent=43 // pred_check
          %p272 = pneg %p122
        $region46: #{reparameterize.1} parent=43 // pred_check_branch
          %274 = sbr.rel (%p272) target = $region48
        $region47: #{reparameterize.1} parent=43 // pred_region
          %s275 = sand.u32 %s107, 1
          %s276 = scalar_lea.sflag [#allocation4], %s275
          %s277 = sand.u32 %s107, 1
          %s278 = smul.addr %s277, 16
          %s279 = scalar_lea.vmem [#allocation5], %s278
          %281 = dma.done %s276, 256
        $region48: #{reparameterize.1} parent=43 // pred_fallthru
          _
      $region44: #{reparameterize.1} parent=5 // pred_fallthru
        _
    $region6: #{reparameterize.1} parent=1 // loop_footer
      %s19 = sadd.s32 1, %s15
    $region7: #{reparameterize.1} parent=1 // loop_footer_branch
      %14 = sbr.rel target = $region3
    $region8: #{reparameterize.1} parent=1 // loop_exit
      _
    %282 = vsyncpa [#allocation3], 1
    %s283 = scalar_lea.sflag [#allocation3], 1
    %284 = vsyncpa %s283, 1
    %285 = vsyncpa [#allocation4], 1
    %s286 = scalar_lea.sflag [#allocation4], 1
    %287 = vsyncpa %s286, 1

</llo_original>
